<compile_context>
chip_gen: v6e
topology: v6e:2x2x1
jax: 0.10.0
libtpu: 0.0.40
codegen_flags: <defaults>
</compile_context>

<pallas_src>
import functools

import jax
import jax.numpy as jnp
from jax.experimental import pallas as pl
from jax.experimental.pallas import tpu as pltpu


# ------------------------------ tiling utils ------------------------------ #

def _pick_tile(dim: int, pref: int, align: int) -> int:
    """Largest multiple-of-`align` tile <= pref that divides dim, else dim."""
    if dim <= pref:
        return dim
    t = (min(pref, dim) // align) * align
    while t >= align:
        if dim % t == 0:
            return t
        t -= align
    return dim


_VMEM_LIMIT = 48 * 1024 * 1024  # stays under v7x's 64 MiB physical VMEM


# ----------------------------- Pallas kernels ----------------------------- #

def _linear_kernel(x_ref, w_ref, b_ref, o_ref, acc_ref, *, apply_relu):
    """Tiled y = act(x @ W + b): f32 accumulate over K, epilogue at k==last."""
    k = pl.program_id(2)

    @pl.when(k == 0)
    def _():
        acc_ref[...] = jnp.zeros_like(acc_ref)

    acc_ref[...] += jnp.dot(x_ref[...], w_ref[...],
                            preferred_element_type=jnp.float32)

    @pl.when(k == pl.num_programs(2) - 1)
    def _():
        y = acc_ref[...] + b_ref[...].astype(jnp.float32)  # bias added ONCE
        if apply_relu:
            y = jnp.maximum(y, 0.0)
        o_ref[...] = y.astype(o_ref.dtype)


def _masked_pool_kernel(h_ref, m_ref, inv_ref, o_ref, acc_ref):
    """Masked mean over the sequence axis, tiled over (De, S)."""
    s = pl.program_id(1)

    @pl.when(s == 0)
    def _():
        acc_ref[...] = jnp.zeros_like(acc_ref)

    h = h_ref[...]                       # (B, tS, tDe) bf16
    m = m_ref[...]                       # (B, tS)      bf16 (0/1 -> exact mul)
    hm = h * m[:, :, None]               # bf16 VPU multiply
    acc_ref[...] += jnp.sum(hm, axis=1, dtype=jnp.float32)  # f32 accumulate

    @pl.when(s == pl.num_programs(1) - 1)
    def _():
        o_ref[...] = (acc_ref[...] * inv_ref[...]).astype(o_ref.dtype)


# ------------------------------ wrappers ---------------------------------- #

def linear_pallas(x, w, b, *, apply_relu=False, tm=256, tn=256, tk=512,
                  out_dtype=jnp.bfloat16):
    """y = act(x @ W + b) with x:(M,K), W:(K,N), b:(1,N)."""
    M, K = x.shape
    K2, N = w.shape
    assert K == K2 and b.shape == (1, N)
    tm = _pick_tile(M, tm, 8)
    tn = _pick_tile(N, tn, 128)
    tk = _pick_tile(K, tk, 128)
    grid = (M // tm, N // tn, K // tk)
    kernel = functools.partial(_linear_kernel, apply_relu=apply_relu)
    return pl.pallas_call(
        kernel,
        out_shape=jax.ShapeDtypeStruct((M, N), out_dtype),
        grid_spec=pltpu.PrefetchScalarGridSpec(
            num_scalar_prefetch=0,
            grid=grid,
            in_specs=[
                pl.BlockSpec((tm, tk), lambda i, j, k: (i, k)),
                pl.BlockSpec((tk, tn), lambda i, j, k: (k, j)),
                pl.BlockSpec((1, tn), lambda i, j, k: (0, j)),
            ],
            out_specs=pl.BlockSpec((tm, tn), lambda i, j, k: (i, j)),
            scratch_shapes=[pltpu.VMEM((tm, tn), jnp.float32)],
        ),
        compiler_params=pltpu.CompilerParams(
            dimension_semantics=("parallel", "parallel", "arbitrary"),
            vmem_limit_bytes=_VMEM_LIMIT,
        ),
        cost_estimate=pl.CostEstimate(
            flops=2 * M * N * K,
            transcendentals=0,
            bytes_accessed=(M * K + K * N + M * N) * 2 + N * 2,
        ),
    )(x, w, b)


def masked_mean_pool(hidden, mask_bf16, inv_len, *, tS=512, tDe=256):
    """Masked mean over seq axis: hidden (B,S,De), mask (B,S), inv_len (B,1)."""
    B, S, De = hidden.shape
    tS = _pick_tile(S, tS, 128)
    tDe = _pick_tile(De, tDe, 128)
    grid = (De // tDe, S // tS)  # reduction (S) axis last
    return pl.pallas_call(
        _masked_pool_kernel,
        out_shape=jax.ShapeDtypeStruct((B, De), jnp.bfloat16),
        grid_spec=pltpu.PrefetchScalarGridSpec(
            num_scalar_prefetch=0,
            grid=grid,
            in_specs=[
                pl.BlockSpec((B, tS, tDe), lambda j, s: (0, s, j)),
                pl.BlockSpec((B, tS), lambda j, s: (0, s)),
                pl.BlockSpec((B, 1), lambda j, s: (0, 0)),
            ],
            out_specs=pl.BlockSpec((B, tDe), lambda j, s: (0, j)),
            scratch_shapes=[pltpu.VMEM((B, tDe), jnp.float32)],
        ),
        compiler_params=pltpu.CompilerParams(
            dimension_semantics=("parallel", "arbitrary"),
            vmem_limit_bytes=_VMEM_LIMIT,
        ),
        cost_estimate=pl.CostEstimate(
            flops=2 * B * S * De,
            transcendentals=0,
            bytes_accessed=B * S * De * 2 + B * S * 2 + B * De * 2 + B * 4,
        ),
    )(hidden, mask_bf16, inv_len)


# ------------------------------ Lusifer ------------------------------------ #

class LusiferPallas:
    """connection_type='ff', num_added_tokens=0, pooling_method='mean'."""

    def __init__(self, key, vocab_size, universal_dim, encoder_dim):
        self.universal_dim = universal_dim
        self.encoder_dim = encoder_dim
        self.num_added_tokens = 0
        k = jax.random.split(key, 6)
        init = lambda kk, shape: (0.02 * jax.random.normal(kk, shape, jnp.float32)
                                  ).astype(jnp.bfloat16)
        # TODO(synk): universal_learner is a pretrained HF transformer backbone
        # (e.g. mT5/XLM-R); only its output embedding table is stood in here.
        self.embed = init(k[0], (vocab_size, universal_dim))
        # connection_module (FFWithAddedTokens, num_added_tokens=0) -> Linear
        self.w_conn = init(k[1], (universal_dim, encoder_dim))
        self.b_conn = init(k[2], (1, encoder_dim))
        # output_projection: Linear(De,De) -> ReLU -> Linear(De,De)
        self.w1 = init(k[3], (encoder_dim, encoder_dim))
        self.b1 = init(k[4], (1, encoder_dim))
        self.w2 = init(k[5], (encoder_dim, encoder_dim))
        self.b2 = jnp.zeros((1, encoder_dim), jnp.bfloat16)

    def forward(self, input_ids, attention_mask):
        B, S = input_ids.shape
        # --- universal learner (stand-in: embedding lookup, plain JAX glue)
        universal_rep = jnp.take(self.embed, input_ids, axis=0)   # (B,S,Du) bf16

        # --- connection module (ff): tiled Pallas matmul kernel
        x2d = universal_rep.reshape(B * S, self.universal_dim)
        conn = linear_pallas(x2d, self.w_conn, self.b_conn, apply_relu=False)
        conn = conn.reshape(B, S, self.encoder_dim)                # (B,S,De)

        # --- construct_input_attn_mask: num_added_tokens == 0 -> unchanged
        attn_mask = jnp.concatenate(
            [attention_mask,
             jnp.ones((B, self.num_added_tokens), attention_mask.dtype)], axis=1)

        # TODO(synk): encoder is a pretrained bidirectional LLM backbone
        # (Mistral/Llama/...); its last hidden state is stood in by the
        # connection output passthrough.
        encoder_rep = conn                                         # (B,S,De)

        # --- masked mean pooling (tiled Pallas kernel)
        # mask kept lane-dense (B,S) bf16; 1/len precomputed host-side in f32.
        mask_bf16 = attn_mask.astype(jnp.bfloat16)                 # (B,S)
        lens = jnp.sum(attn_mask.astype(jnp.float32), axis=1, keepdims=True)
        inv_len = 1.0 / jnp.maximum(lens, 1.0)  # guard all-pad rows (B,1) f32
        pooled = masked_mean_pool(encoder_rep, mask_bf16, inv_len)  # (B,De) bf16

        # --- output_projection under bf16 autocast: Linear -> ReLU -> Linear
        h1 = linear_pallas(pooled, self.w1, self.b1, apply_relu=True)
        proj = linear_pallas(h1, self.w2, self.b2, apply_relu=False)
        return {"reps": proj, "projection": proj}


# -------------------------------- main ------------------------------------- #

if __name__ == "__main__":
    # small but lane-dense demo dims (multiples of 128 on matmul/lane axes)
    B, S = 2, 16
    VOCAB, D_UNIVERSAL, D_ENCODER = 128, 128, 256

    key = jax.random.PRNGKey(0)
    k_model, k_ids = jax.random.split(key)

    model = LusiferPallas(k_model, VOCAB, D_UNIVERSAL, D_ENCODER)

    input_ids = jax.random.randint(k_ids, (B, S), 0, VOCAB, dtype=jnp.int32)
    # right-padded attention mask (row 1 has 4 pad tokens), sum > 0 per row
    attention_mask = jnp.concatenate(
        [jnp.ones((1, S), jnp.int32),
         jnp.concatenate([jnp.ones((1, S - 4), jnp.int32),
                          jnp.zeros((1, 4), jnp.int32)], axis=1)],
        axis=0)

    out = model.forward(input_ids, attention_mask)
    jax.block_until_ready(out["reps"])
    assert out["reps"].shape == (B, D_ENCODER)
    assert out["reps"].dtype == jnp.bfloat16
    print("KERNEL_OK")
</pallas_src>

<mosaic_0001>
module attributes {stable_mosaic.version = 11 : i64} {
  func.func @_linear_kernel(%arg0: i32, %arg1: i32, %arg2: i32, %arg3: memref<32x128xbf16, #tpu.memory_space<vmem>>, %arg4: memref<128x256xbf16, #tpu.memory_space<vmem>>, %arg5: memref<1x256xbf16, #tpu.memory_space<vmem>>, %arg6: memref<32x256xbf16, #tpu.memory_space<vmem>>, %arg7: memref<32x256xf32, #tpu.memory_space<vmem>>) attributes {dimension_semantics = [#tpu.dimension_semantics<parallel>, #tpu.dimension_semantics<parallel>, #tpu.dimension_semantics<arbitrary>], iteration_bounds = array<i64: 1, 1, 1>, scalar_prefetch = 0 : i64, scratch_operands = 1 : i64, tpu.core_type = #tpu.core_type<tc>, window_params = [{transform_indices = @transform_0, window_bounds = array<i64: 32, 128>}, {transform_indices = @transform_1, window_bounds = array<i64: 128, 256>}, {transform_indices = @transform_2, window_bounds = array<i64: 1, 256>}, {transform_indices = @transform_3, window_bounds = array<i64: 32, 256>}]} {
    %c0_i32 = arith.constant 0 : i32
    %0 = arith.cmpi eq, %arg2, %c0_i32 : i32
    %1 = arith.extui %0 : i1 to i32
    %c0_i32_0 = arith.constant 0 : i32
    %2 = arith.cmpi ne, %1, %c0_i32_0 : i32
    scf.if %2 {
      %cst_10 = arith.constant 0.000000e+00 : f32
      %12 = vector.broadcast %cst_10 : f32 to vector<32x256xf32>
      %c0_11 = arith.constant 0 : index
      %c0_12 = arith.constant 0 : index
      %13 = vector.load %arg7[%c0_11, %c0_12] : memref<32x256xf32, #tpu.memory_space<vmem>>, vector<32x256xf32>
      tpu.vector_store %arg7[%c0_11, %c0_12], %12 {strides = array<i32>} : memref<32x256xf32, #tpu.memory_space<vmem>>, vector<32x256xf32>,
    } else {
    }
    %c0 = arith.constant 0 : index
    %c0_1 = arith.constant 0 : index
    %3 = vector.load %arg7[%c0, %c0_1] : memref<32x256xf32, #tpu.memory_space<vmem>>, vector<32x256xf32>
    %c0_2 = arith.constant 0 : index
    %c0_3 = arith.constant 0 : index
    %4 = vector.load %arg3[%c0_2, %c0_3] : memref<32x128xbf16, #tpu.memory_space<vmem>>, vector<32x128xbf16>
    %c0_4 = arith.constant 0 : index
    %c0_5 = arith.constant 0 : index
    %5 = vector.load %arg4[%c0_4, %c0_5] : memref<128x256xbf16, #tpu.memory_space<vmem>>, vector<128x256xbf16>
    %cst = arith.constant dense<0.000000e+00> : vector<32x256xf32>
    %6 = tpu.matmul %4, %5, %cst {dimension_numbers = #tpu.dot_dimension_numbers<[1], [0], [0], [1], [0, 0, 1, 1], [], []>} : vector<32x128xbf16>, vector<128x256xbf16>, vector<32x256xf32> -> vector<32x256xf32>
    %7 = arith.addf %3, %6 : vector<32x256xf32>
    %c0_6 = arith.constant 0 : index
    %c0_7 = arith.constant 0 : index
    %8 = vector.load %arg7[%c0_6, %c0_7] : memref<32x256xf32, #tpu.memory_space<vmem>>, vector<32x256xf32>
    tpu.vector_store %arg7[%c0_6, %c0_7], %7 {strides = array<i32>} : memref<32x256xf32, #tpu.memory_space<vmem>>, vector<32x256xf32>,
    %c0_i32_8 = arith.constant 0 : i32
    %9 = arith.cmpi eq, %arg2, %c0_i32_8 : i32
    %10 = arith.extui %9 : i1 to i32
    %c0_i32_9 = arith.constant 0 : i32
    %11 = arith.cmpi ne, %10, %c0_i32_9 : i32
    scf.if %11 {
      %c0_10 = arith.constant 0 : index
      %c0_11 = arith.constant 0 : index
      %12 = vector.load %arg7[%c0_10, %c0_11] : memref<32x256xf32, #tpu.memory_space<vmem>>, vector<32x256xf32>
      %c0_12 = arith.constant 0 : index
      %c0_13 = arith.constant 0 : index
      %13 = vector.load %arg5[%c0_12, %c0_13] : memref<1x256xbf16, #tpu.memory_space<vmem>>, vector<1x256xbf16>
      %14 = arith.extf %13 : vector<1x256xbf16> to vector<1x256xf32>
      %15 = vector.broadcast %14 : vector<1x256xf32> to vector<32x256xf32>
      %16 = arith.addf %12, %15 : vector<32x256xf32>
      %17 = arith.truncf %16 : vector<32x256xf32> to vector<32x256xbf16>
      %c0_14 = arith.constant 0 : index
      %c0_15 = arith.constant 0 : index
      %18 = vector.load %arg6[%c0_14, %c0_15] : memref<32x256xbf16, #tpu.memory_space<vmem>>, vector<32x256xbf16>
      tpu.vector_store %arg6[%c0_14, %c0_15], %17 {strides = array<i32>} : memref<32x256xbf16, #tpu.memory_space<vmem>>, vector<32x256xbf16>,
    } else {
    }
    return
  }
  func.func @transform_0(%arg0: i32, %arg1: i32, %arg2: i32) -> (i32, i32) {
    %c0_i32 = arith.constant 0 : i32
    return %arg0, %arg2 : i32, i32
  }
  func.func @transform_1(%arg0: i32, %arg1: i32, %arg2: i32) -> (i32, i32) {
    %c0_i32 = arith.constant 0 : i32
    return %arg2, %arg1 : i32, i32
  }
  func.func @transform_2(%arg0: i32, %arg1: i32, %arg2: i32) -> (i32, i32) {
    %c0_i32 = arith.constant 0 : i32
    %c0_i32_0 = arith.constant 0 : i32
    return %c0_i32, %arg1 : i32, i32
  }
  func.func @transform_3(%arg0: i32, %arg1: i32, %arg2: i32) -> (i32, i32) {
    %c0_i32 = arith.constant 0 : i32
    return %arg0, %arg1 : i32, i32
  }
}

</mosaic_0001>

<llo_original>
// kernel: tpu_custom_call.1
$region0: #{tpu_custom_call.1}
  #allocation0 [shape = 'u32[]', space=smem, size = 0x4, offset = 0x4, fixed_abs, tag = 'smem constant byte address 0x4 - core index']
  #allocation1 [shape = 'u32[144,128]{1,0:T(1,128)}', space=vmem, size = 0x12000, scoped, tag = 'internal scratch']
  #allocation2 [shape = 'f32[32,256]{1,0:T(8,128)}', space=vmem, size = 0x8000, scoped, tag = 'scratch operand']
  %s0 = inlined_call_operand.hbm [shape: bf16[32,128], index: 0, kind: input, shape index: {}]
  %s1 = inlined_call_operand.hbm [shape: bf16[128,256], index: 1, kind: input, shape index: {}]
  %s2 = inlined_call_operand.vmem [shape: bf16[1,256], index: 2, kind: input, shape index: {}]
  %s3 = inlined_call_operand.hbm [shape: bf16[32,256], index: 3, kind: output, shape index: {}]
  %s4 = sld [smem:[#allocation0]]
  $region38: #{tpu_custom_call.1} parent=0
    _
  %s6 = ssub.s32 1, %s4
  %s7 = scalar_select 0, %s6, %s4
  $region1: #{tpu_custom_call.1} parent=0
    #allocation3 [shape = 'u8[8192]{0}', space=vmem, size = 0x2000, scoped, tag = 'input window, operand 0, single buffered']
    #allocation4 [shape = 's32[1]{0}', space=sflag, size = 0x4, scoped, tag = 'scoped memory for tpu_custom_call.1']
    #allocation5 [shape = 's32[1]{0}', space=sflag, size = 0x4, scoped, tag = 'scoped memory for tpu_custom_call.1']
    #allocation6 [shape = 'u8[65536]{0}', space=vmem, size = 0x10000, scoped, tag = 'input window, operand 1, single buffered']
    #allocation7 [shape = 's32[1]{0}', space=sflag, size = 0x4, scoped, tag = 'scoped memory for tpu_custom_call.1']
    #allocation8 [shape = 'u8[16384]{0}', space=vmem, size = 0x4000, scoped, tag = 'output window, operand 0, single buffered']
    %8 = vsyncpa [#allocation4], 0
    %9 = vsyncpa [#allocation7], 0
    %10 = vsyncpa [#allocation5], 0
    // Predicated region
    $region2: #{tpu_custom_call.1} parent=1 // pred_check
      _
    $region3: #{tpu_custom_call.1} parent=1 // pred_check_branch
      %12 = sbr.rel (0) target = $region5
    $region4: #{tpu_custom_call.1} parent=1 // pred_region
      %s14 = ssub.s32 256, 256
      %15 = vsyncadd [#allocation4], %s14
      %s16 = sshll.u32 [#allocation3], 4
      %s17 = int_to_ptr.vmem [resolvable:$true] %s16
      %22 = dma.hbm_to_vmem [thread:$0]  %s0, 256, %s17, [#allocation4], 64, 64, 4
    $region5: #{tpu_custom_call.1} parent=1 // pred_fallthru
      _
    // Predicated region
    $region6: #{tpu_custom_call.1} parent=1 // pred_check
      _
    $region7: #{tpu_custom_call.1} parent=1 // pred_check_branch
      %24 = sbr.rel (0) target = $region9
    $region8: #{tpu_custom_call.1} parent=1 // pred_region
      %s26 = ssub.s32 2048, 2048
      %27 = vsyncadd [#allocation7], %s26
      %s28 = sshll.u32 [#allocation6], 4
      %s29 = int_to_ptr.vmem [resolvable:$true] %s28
      %34 = dma.hbm_to_vmem [thread:$0]  %s1, 2048, %s29, [#allocation7], 128, 128, 8
    $region9: #{tpu_custom_call.1} parent=1 // pred_fallthru
      _
    // Predicated region
    $region10: #{tpu_custom_call.1} parent=1 // pred_check
      _
    $region11: #{tpu_custom_call.1} parent=1 // pred_check_branch
      %36 = sbr.rel (0) target = $region13
    $region12: #{tpu_custom_call.1} parent=1 // pred_region
      _
    $region13: #{tpu_custom_call.1} parent=1 // pred_fallthru
      _
    // Predicated region
    $region14: #{tpu_custom_call.1} parent=1 // pred_check
      _
    $region15: #{tpu_custom_call.1} parent=1 // pred_check_branch
      %38 = sbr.rel (0) target = $region17
    $region16: #{tpu_custom_call.1} parent=1 // pred_region
      %39 = dma.done [#allocation4], 256
    $region17: #{tpu_custom_call.1} parent=1 // pred_fallthru
      _
    // Predicated region
    $region18: #{tpu_custom_call.1} parent=1 // pred_check
      _
    $region19: #{tpu_custom_call.1} parent=1 // pred_check_branch
      %41 = sbr.rel (0) target = $region21
    $region20: #{tpu_custom_call.1} parent=1 // pred_region
      %42 = dma.done [#allocation7], 2048
    $region21: #{tpu_custom_call.1} parent=1 // pred_fallthru
      _
    %p44 = scmp.eq.s32.totalorder 0, 0
    // Predicated region
    $region22: #{tpu_custom_call.1} parent=1 // pred_check
      %p45 = pneg %p44
    $region23: #{tpu_custom_call.1} parent=1 // pred_check_branch
      %47 = sbr.rel (%p45) target = $region25
    $region24: #{tpu_custom_call.1} parent=1 // pred_region
      %48 = vst [vmem:[#allocation2] sm:$0xff] 0.0
      %49 = vst [vmem:[#allocation2 + $0x8] sm:$0xff] 0.0
      %50 = vst [vmem:[#allocation2 + $0x10] sm:$0xff] 0.0
      %51 = vst [vmem:[#allocation2 + $0x18] sm:$0xff] 0.0
      %52 = vst [vmem:[#allocation2 + $0x20] sm:$0xff] 0.0
      %53 = vst [vmem:[#allocation2 + $0x28] sm:$0xff] 0.0
      %54 = vst [vmem:[#allocation2 + $0x30] sm:$0xff] 0.0
      %55 = vst [vmem:[#allocation2 + $0x38] sm:$0xff] 0.0
    $region25: #{tpu_custom_call.1} parent=1 // pred_fallthru
      _
    %v56 = vld [vmem:[#allocation2] sm:$0xff]
    %v57 = vld [vmem:[#allocation2 + $0x8] sm:$0xff]
    %v58 = vld [vmem:[#allocation2 + $0x10] sm:$0xff]
    %v59 = vld [vmem:[#allocation2 + $0x18] sm:$0xff]
    %v60 = vld [vmem:[#allocation2 + $0x20] sm:$0xff]
    %v61 = vld [vmem:[#allocation2 + $0x28] sm:$0xff]
    %v62 = vld [vmem:[#allocation2 + $0x30] sm:$0xff]
    %v63 = vld [vmem:[#allocation2 + $0x38] sm:$0xff]
    %v64 = vld [vmem:[#allocation3] sm:$0xf]
    %v65 = vld [vmem:[#allocation3 + $0x4] sm:$0xf]
    %v66 = vld [vmem:[#allocation3 + $0x8] sm:$0xf]
    %v67 = vld [vmem:[#allocation3 + $0xc] sm:$0xf]
    %v68 = vld [vmem:[#allocation6] sm:$0xff]
    %v69 = vld [vmem:[#allocation6 + $0x8] sm:$0xff]
    %v70 = vld [vmem:[#allocation6 + $0x10] sm:$0xff]
    %v71 = vld [vmem:[#allocation6 + $0x18] sm:$0xff]
    %v72 = vld [vmem:[#allocation6 + $0x20] sm:$0xff]
    %v73 = vld [vmem:[#allocation6 + $0x28] sm:$0xff]
    %v74 = vld [vmem:[#allocation6 + $0x30] sm:$0xff]
    %v75 = vld [vmem:[#allocation6 + $0x38] sm:$0xff]
    %v76 = vld [vmem:[#allocation6 + $0x40] sm:$0xff]
    %v77 = vld [vmem:[#allocation6 + $0x48] sm:$0xff]
    %v78 = vld [vmem:[#allocation6 + $0x50] sm:$0xff]
    %v79 = vld [vmem:[#allocation6 + $0x58] sm:$0xff]
    %v80 = vld [vmem:[#allocation6 + $0x60] sm:$0xff]
    %v81 = vld [vmem:[#allocation6 + $0x68] sm:$0xff]
    %v82 = vld [vmem:[#allocation6 + $0x70] sm:$0xff]
    %v83 = vld [vmem:[#allocation6 + $0x78] sm:$0xff]
    %v88 = vunpack.c.l.b16 %v64
    %v89 = vunpack.c.l.b16 %v65
    %v90 = vunpack.c.l.b16 %v66
    %v91 = vunpack.c.l.b16 %v67
    %v92 = vpack.c.b16 %v89, %v88
    %v93 = vpack.c.b16 %v91, %v90
    %v112 = vunpack.c.l.b16 %v68
    %v113 = vunpack.c.h.b16 %v68
    %v114 = vunpack.c.l.b16 %v69
    %v115 = vunpack.c.h.b16 %v69
    %v116 = vunpack.c.l.b16 %v70
    %v117 = vunpack.c.h.b16 %v70
    %v118 = vunpack.c.l.b16 %v71
    %v119 = vunpack.c.h.b16 %v71
    %v120 = vunpack.c.l.b16 %v72
    %v121 = vunpack.c.h.b16 %v72
    %v122 = vunpack.c.l.b16 %v73
    %v123 = vunpack.c.h.b16 %v73
    %v124 = vunpack.c.l.b16 %v74
    %v125 = vunpack.c.h.b16 %v74
    %v126 = vunpack.c.l.b16 %v75
    %v127 = vunpack.c.h.b16 %v75
    %v128 = vunpack.c.l.b16 %v76
    %v129 = vunpack.c.h.b16 %v76
    %v130 = vunpack.c.l.b16 %v77
    %v131 = vunpack.c.h.b16 %v77
    %v132 = vunpack.c.l.b16 %v78
    %v133 = vunpack.c.h.b16 %v78
    %v134 = vunpack.c.l.b16 %v79
    %v135 = vunpack.c.h.b16 %v79
    %v136 = vunpack.c.l.b16 %v80
    %v137 = vunpack.c.h.b16 %v80
    %v138 = vunpack.c.l.b16 %v81
    %v139 = vunpack.c.h.b16 %v81
    %v140 = vunpack.c.l.b16 %v82
    %v141 = vunpack.c.h.b16 %v82
    %v142 = vunpack.c.l.b16 %v83
    %v143 = vunpack.c.h.b16 %v83
    %v144 = vpack.c.b16 %v114, %v112
    %v145 = vpack.c.b16 %v115, %v113
    %v146 = vpack.c.b16 %v118, %v116
    %v147 = vpack.c.b16 %v119, %v117
    %v148 = vpack.c.b16 %v122, %v120
    %v149 = vpack.c.b16 %v123, %v121
    %v150 = vpack.c.b16 %v126, %v124
    %v151 = vpack.c.b16 %v127, %v125
    %v152 = vpack.c.b16 %v130, %v128
    %v153 = vpack.c.b16 %v131, %v129
    %v154 = vpack.c.b16 %v134, %v132
    %v155 = vpack.c.b16 %v135, %v133
    %v156 = vpack.c.b16 %v138, %v136
    %v157 = vpack.c.b16 %v139, %v137
    %v158 = vpack.c.b16 %v142, %v140
    %v159 = vpack.c.b16 %v143, %v141
    %176 = vmatprep.subr.bf16.mxu0 %v159
    %177 = vmatpush1.bf16.msra.mxu0 %v158
    %178 = vmatprep.subr.bf16.mxu0 %v157
    %179 = vmatpush1.bf16.msra.mxu0 %v156
    %180 = vmatprep.subr.bf16.mxu0 %v155
    %181 = vmatpush1.bf16.msra.mxu0 %v154
    %182 = vmatprep.subr.bf16.mxu0 %v153
    %183 = vmatpush1.bf16.msra.mxu0 %v152
    %184 = vmatprep.subr.bf16.mxu0 %v151
    %185 = vmatpush1.bf16.msra.mxu0 %v150
    %186 = vmatprep.subr.bf16.mxu0 %v149
    %187 = vmatpush1.bf16.msra.mxu0 %v148
    %188 = vmatprep.subr.bf16.mxu0 %v147
    %189 = vmatpush1.bf16.msra.mxu0 %v146
    %190 = vmatprep.subr.bf16.mxu0 %v145
    %191 = vmatpush1.bf16.msra.mxu0 %v144
    %192 = vmatprep.subr.bf16.mxu0 0
    %193 = vmatpush2.bf16.msra.mxu0 0
    %194 = vmatprep.subr.bf16.mxu0 0
    %195 = vmatpush2.bf16.msra.mxu0 0
    %196 = vmatprep.subr.bf16.mxu0 0
    %197 = vmatpush2.bf16.msra.mxu0 0
    %198 = vmatprep.subr.bf16.mxu0 0
    %199 = vmatpush2.bf16.msra.mxu0 0
    %200 = vmatprep.subr.bf16.mxu0 0
    %201 = vmatpush2.bf16.msra.mxu0 0
    %202 = vmatprep.subr.bf16.mxu0 0
    %203 = vmatpush2.bf16.msra.mxu0 0
    %204 = vmatprep.subr.bf16.mxu0 0
    %205 = vmatpush2.bf16.msra.mxu0 0
    %206 = vmatprep.subr.bf16.mxu0 0
    %207 = vmatpush2.bf16.msra.mxu0 0
    %208 = vmatprep.mubr.bf16.mxu0 0
    %209 = vmatmul.mubr.bf16.gmra.mxu0 %v92
    %v210 = vpop.f32.mrf.mxu0
    %v211 = vadd.f32 0.0, %v210
    %v212 = vpop.f32.mrf.mxu0
    %v213 = vadd.f32 0.0, %v212
    %v214 = vpop.f32.mrf.mxu0
    %v215 = vadd.f32 0.0, %v214
    %v216 = vpop.f32.mrf.mxu0
    %v217 = vadd.f32 0.0, %v216
    %218 = vmatprep.mubr.bf16.mxu0 0
    %219 = vmatmul.mubr.bf16.gmra.mxu0 %v93
    %v220 = vpop.f32.mrf.mxu0
    %v221 = vadd.f32 0.0, %v220
    %v222 = vpop.f32.mrf.mxu0
    %v223 = vadd.f32 0.0, %v222
    %v224 = vpop.f32.mrf.mxu0
    %v225 = vadd.f32 0.0, %v224
    %v226 = vpop.f32.mrf.mxu0
    %v227 = vadd.f32 0.0, %v226
    %228 = vdwg.mxu0
    %v229 = vadd.f32 %v56, %v211
    %v230 = vadd.f32 %v57, %v213
    %v231 = vadd.f32 %v58, %v215
    %v232 = vadd.f32 %v59, %v217
    %v233 = vadd.f32 %v60, %v221
    %v234 = vadd.f32 %v61, %v223
    %v235 = vadd.f32 %v62, %v225
    %v236 = vadd.f32 %v63, %v227
    %237 = vst [vmem:[#allocation2] sm:$0xff] %v229
    %238 = vst [vmem:[#allocation2 + $0x8] sm:$0xff] %v230
    %239 = vst [vmem:[#allocation2 + $0x10] sm:$0xff] %v231
    %240 = vst [vmem:[#allocation2 + $0x18] sm:$0xff] %v232
    %241 = vst [vmem:[#allocation2 + $0x20] sm:$0xff] %v233
    %242 = vst [vmem:[#allocation2 + $0x28] sm:$0xff] %v234
    %243 = vst [vmem:[#allocation2 + $0x30] sm:$0xff] %v235
    %244 = vst [vmem:[#allocation2 + $0x38] sm:$0xff] %v236
    // Predicated region
    $region26: #{tpu_custom_call.1} parent=1 // pred_check
      %p245 = pneg %p44
    $region27: #{tpu_custom_call.1} parent=1 // pred_check_branch
      %247 = sbr.rel (%p245) target = $region29
    $region28: #{tpu_custom_call.1} parent=1 // pred_region
      %v248 = vld [vmem:[#allocation2] sm:$0xff]
      %v249 = vld [vmem:[#allocation2 + $0x8] sm:$0xff]
      %v250 = vld [vmem:[#allocation2 + $0x10] sm:$0xff]
      %v251 = vld [vmem:[#allocation2 + $0x18] sm:$0xff]
      %v252 = vld [vmem:[#allocation2 + $0x20] sm:$0xff]
      %v253 = vld [vmem:[#allocation2 + $0x28] sm:$0xff]
      %v254 = vld [vmem:[#allocation2 + $0x30] sm:$0xff]
      %v255 = vld [vmem:[#allocation2 + $0x38] sm:$0xff]
      %v256 = vld [vmem:[%s2] sm:$0x3]
      %v257 = vunpack.c.l.bf16 %v256
      %v259 = vlaneseq
      %v260 = vshrl.u32 %v259, 7
      %v261 = vsub.s32 0, %v260
      %v262 = vrot.slane %v257, %v261
      %v263 = vlaneseq
      %v264 = vshrl.u32 %v263, 7
      %v265 = vsub.s32 2, %v264
      %v266 = vrot.slane %v257, %v265
      %v269 = vlaneseq
      %v270 = vshrl.u32 %v269, 7
      %v271 = vsub.s32 0, %v270
      %v272 = vrot.slane %v262, %v271
      %v273 = vlaneseq
      %v274 = vshrl.u32 %v273, 7
      %v275 = vsub.s32 0, %v274
      %v276 = vrot.slane %v266, %v275
      %v277 = vadd.f32 %v248, %v272
      %v278 = vadd.f32 %v249, %v276
      %v279 = vadd.f32 %v250, %v272
      %v280 = vadd.f32 %v251, %v276
      %v281 = vadd.f32 %v252, %v272
      %v282 = vadd.f32 %v253, %v276
      %v283 = vadd.f32 %v254, %v272
      %v284 = vadd.f32 %v255, %v276
      %v285 = vpack.c.bf16 %v279, %v277
      %v286 = vpack.c.bf16 %v280, %v278
      %v287 = vpack.c.bf16 %v283, %v281
      %v288 = vpack.c.bf16 %v284, %v282
      %v293 = vunpack.c.l.b16 %v285
      %v294 = vunpack.c.l.b16 %v286
      %v295 = vunpack.c.h.b16 %v285
      %v296 = vunpack.c.h.b16 %v286
      %v297 = vunpack.c.l.b16 %v287
      %v298 = vunpack.c.l.b16 %v288
      %v299 = vunpack.c.h.b16 %v287
      %v300 = vunpack.c.h.b16 %v288
      %v301 = vpack.c.b16 %v294, %v293
      %v302 = vpack.c.b16 %v296, %v295
      %v303 = vpack.c.b16 %v298, %v297
      %v304 = vpack.c.b16 %v300, %v299
      %309 = vst [vmem:[#allocation8] sm:$0xff] %v301
      %310 = vst [vmem:[#allocation8 + $0x8] sm:$0xff] %v302
      %311 = vst [vmem:[#allocation8 + $0x10] sm:$0xff] %v303
      %312 = vst [vmem:[#allocation8 + $0x18] sm:$0xff] %v304
    $region29: #{tpu_custom_call.1} parent=1 // pred_fallthru
      _
    // Predicated region
    $region30: #{tpu_custom_call.1} parent=1 // pred_check
      _
    $region31: #{tpu_custom_call.1} parent=1 // pred_check_branch
      %314 = sbr.rel (0) target = $region33
    $region32: #{tpu_custom_call.1} parent=1 // pred_region
      %s316 = ssub.s32 512, 512
      %317 = vsyncadd [#allocation5], %s316
      %s318 = sshll.u32 [#allocation8], 4
      %s319 = int_to_ptr.vmem [resolvable:$true] %s318
      %324 = dma.vmem_to_hbm [thread:$0]  %s319, 512, %s3, [#allocation5], 128, 128, 8
    $region33: #{tpu_custom_call.1} parent=1 // pred_fallthru
      _
    // Predicated region
    $region34: #{tpu_custom_call.1} parent=1 // pred_check
      _
    $region35: #{tpu_custom_call.1} parent=1 // pred_check_branch
      %326 = sbr.rel (0) target = $region37
    $region36: #{tpu_custom_call.1} parent=1 // pred_region
      %327 = dma.done [#allocation5], 512
    $region37: #{tpu_custom_call.1} parent=1 // pred_fallthru
      _
    %328 = vsyncpa [#allocation4], 1
    %329 = vsyncpa [#allocation7], 1
    %330 = vsyncpa [#allocation5], 1

</llo_original>
